<compile_context>
chip_gen: v5e
topology: v5e:2x2
jax: 0.10.0
libtpu: 0.0.40
codegen_flags: <defaults>
</compile_context>

<pallas_src>
import functools

import jax
import jax.numpy as jnp
from jax import lax
from jax.experimental import pallas as pl
from jax.experimental.pallas import tpu as pltpu


def basic_block_kernel(x_ref, w1_ref, s1_ref, b1_ref, w2_ref, s2_ref, b2_ref,
                       o_ref, *, H, WC):
    """One grid step == one batch element.

    x_ref  : (1, H, WC)   lane-packed input (WC = W*C)
    w1_ref : (3, WC, WC)  banded conv1 matrices (one per kh tap)
    s1/b1  : (1, WC)      folded BN1 scale / bias (tiled to packed layout)
    w2_ref : (3, WC, WC)  banded conv2 matrices
    s2/b2  : (1, WC)      folded BN2 scale / bias
    o_ref  : (1, H, WC)   lane-packed output
    """
    x = x_ref[0].astype(jnp.float32)  # (H, WC)

    def conv3x3(inp, w_ref):
        # Three MXU matmuls; kw taps + width padding are inside the banded
        # matrices, so only the kh (row) shift remains, done on the results.
        y0 = jnp.dot(inp, w_ref[0], preferred_element_type=jnp.float32)
        y1 = jnp.dot(inp, w_ref[1], preferred_element_type=jnp.float32)
        y2 = jnp.dot(inp, w_ref[2], preferred_element_type=jnp.float32)
        zrow = jnp.zeros((1, WC), jnp.float32)
        # out[h] = y0[h-1] + y1[h] + y2[h+1]  (zero rows outside the image)
        return (jnp.concatenate([zrow, y0[:H - 1]], axis=0)
                + y1
                + jnp.concatenate([y2[1:], zrow], axis=0))

    # conv1 + BN1 + ReLU (stays in vregs; no VMEM staging)
    out1 = conv3x3(x, w1_ref)
    out1 = jnp.maximum(out1 * s1_ref[...] + b1_ref[...], 0.0)

    # conv2 + BN2
    out2 = conv3x3(out1, w2_ref)
    out2 = out2 * s2_ref[...] + b2_ref[...]

    # residual add (aligned, unpadded input) + ReLU; lane-dense store
    o_ref[0] = jnp.maximum(out2 + x, 0.0).astype(o_ref.dtype)


def pack_conv3x3_weights(w_hwio, W):
    """Fold the kw taps and the width zero-padding of a 3x3 / pad=1 conv into
    banded matrices, one per kh:  B_kh[(w+kw-1)*Cin + ci, w*Cout + co] =
    w_hwio[kh, kw, ci, co]  (only where 0 <= w+kw-1 < W)."""
    KH, KW, Cin, Cout = w_hwio.shape
    mats = []
    for kh in range(KH):
        B = jnp.zeros((W * Cin, W * Cout), dtype=jnp.float32)
        for kw in range(KW):
            # shift[a, b] = 1  iff  a == b + kw - 1   (valid width positions)
            shift = jnp.eye(W, k=1 - kw, dtype=jnp.float32)
            B = B + jnp.kron(shift, w_hwio[kh, kw].astype(jnp.float32))
        mats.append(B)
    return jnp.stack(mats)  # (3, W*Cin, W*Cout)


def basic_block_pallas(x_nhwc, w1_hwio, s1, b1, w2_hwio, s2, b2):
    N, H, W, C = x_nhwc.shape
    WC = W * C

    # Glue (one-time / cheap): lane-pack activations, build banded conv
    # matrices, tile BN scale/bias to the packed lane layout.
    x_packed = x_nhwc.reshape(N, H, WC)
    w1_b = pack_conv3x3_weights(w1_hwio, W)
    w2_b = pack_conv3x3_weights(w2_hwio, W)
    s1_p = jnp.tile(s1.astype(jnp.float32), W).reshape(1, WC)
    b1_p = jnp.tile(b1.astype(jnp.float32), W).reshape(1, WC)
    s2_p = jnp.tile(s2.astype(jnp.float32), W).reshape(1, WC)
    b2_p = jnp.tile(b2.astype(jnp.float32), W).reshape(1, WC)

    kernel = functools.partial(basic_block_kernel, H=H, WC=WC)

    out = pl.pallas_call(
        kernel,
        out_shape=jax.ShapeDtypeStruct((N, H, WC), x_nhwc.dtype),
        grid_spec=pltpu.PrefetchScalarGridSpec(
            num_scalar_prefetch=0,
            grid=(N,),
            in_specs=[
                pl.BlockSpec((1, H, WC), lambda n: (n, 0, 0)),
                pl.BlockSpec((3, WC, WC), lambda n: (0, 0, 0)),
                pl.BlockSpec((1, WC), lambda n: (0, 0)),
                pl.BlockSpec((1, WC), lambda n: (0, 0)),
                pl.BlockSpec((3, WC, WC), lambda n: (0, 0, 0)),
                pl.BlockSpec((1, WC), lambda n: (0, 0)),
                pl.BlockSpec((1, WC), lambda n: (0, 0)),
            ],
            out_specs=pl.BlockSpec((1, H, WC), lambda n: (n, 0, 0)),
        ),
        compiler_params=pltpu.CompilerParams(
            dimension_semantics=("parallel",)),
    )(x_packed, w1_b, s1_p, b1_p, w2_b, s2_p, b2_p)

    return out.reshape(N, H, W, C)


def basic_block_ref(x_nhwc, w1_hwio, s1, b1, w2_hwio, s2, b2):
    """Pure-JAX reference (for correctness check)."""
    dn = ('NHWC', 'HWIO', 'NHWC')
    out = lax.conv_general_dilated(x_nhwc, w1_hwio, (1, 1), 'SAME',
                                   dimension_numbers=dn)
    out = jnp.maximum(out * s1 + b1, 0.0)
    out = lax.conv_general_dilated(out, w2_hwio, (1, 1), 'SAME',
                                   dimension_numbers=dn)
    out = out * s2 + b2
    return jnp.maximum(out + x_nhwc, 0.0)


if __name__ == "__main__":
    # inplanes = planes = 8, stride=1, downsample=None (module defaults),
    # batch=2, spatial=16x16.  W*C = 128 -> fully lane-packed kernel layout.
    # PyTorch-style input would be NCHW (2, 8, 16, 16).
    N, C, H, W = 2, 8, 16, 16
    key = jax.random.PRNGKey(0)
    k_x, k_w1, k_w2, k_g1, k_b1, k_m1, k_v1, k_g2, k_b2, k_m2, k_v2 = (
        jax.random.split(key, 11))

    # Input in PyTorch NCHW, moved to NHWC for the kernel wrapper.
    x_nchw = jax.random.normal(k_x, (N, C, H, W), dtype=jnp.float32)
    x_nhwc = jnp.transpose(x_nchw, (0, 2, 3, 1))

    # Conv weights, PyTorch OIHW -> HWIO.
    w1_oihw = jax.random.normal(k_w1, (C, C, 3, 3), dtype=jnp.float32) * 0.1
    w2_oihw = jax.random.normal(k_w2, (C, C, 3, 3), dtype=jnp.float32) * 0.1
    w1_hwio = jnp.transpose(w1_oihw, (2, 3, 1, 0))
    w2_hwio = jnp.transpose(w2_oihw, (2, 3, 1, 0))

    # BatchNorm params (inference form), folded to scale/bias.
    eps = 1e-5
    gamma1 = 1.0 + 0.1 * jax.random.normal(k_g1, (C,), dtype=jnp.float32)
    beta1 = 0.1 * jax.random.normal(k_b1, (C,), dtype=jnp.float32)
    mean1 = 0.1 * jax.random.normal(k_m1, (C,), dtype=jnp.float32)
    var1 = jnp.abs(1.0 + 0.1 * jax.random.normal(k_v1, (C,), dtype=jnp.float32))
    gamma2 = 1.0 + 0.1 * jax.random.normal(k_g2, (C,), dtype=jnp.float32)
    beta2 = 0.1 * jax.random.normal(k_b2, (C,), dtype=jnp.float32)
    mean2 = 0.1 * jax.random.normal(k_m2, (C,), dtype=jnp.float32)
    var2 = jnp.abs(1.0 + 0.1 * jax.random.normal(k_v2, (C,), dtype=jnp.float32))

    s1 = gamma1 / jnp.sqrt(var1 + eps)
    b1 = beta1 - mean1 * s1
    s2 = gamma2 / jnp.sqrt(var2 + eps)
    b2 = beta2 - mean2 * s2

    out = basic_block_pallas(x_nhwc, w1_hwio, s1, b1, w2_hwio, s2, b2)
    out = jax.block_until_ready(out)

    ref = basic_block_ref(x_nhwc, w1_hwio, s1, b1, w2_hwio, s2, b2)
    assert jnp.allclose(out, ref, atol=1e-3, rtol=1e-3), \
        f"mismatch: max abs err {jnp.max(jnp.abs(out - ref))}"

    print("KERNEL_OK")
</pallas_src>

<mosaic_0001>
module attributes {stable_mosaic.version = 11 : i64} {
  func.func @basic_block_kernel(%arg0: i32, %arg1: memref<1x16x128xf32, #tpu.memory_space<vmem>>, %arg2: memref<3x128x128xf32, #tpu.memory_space<vmem>>, %arg3: memref<1x128xf32, #tpu.memory_space<vmem>>, %arg4: memref<1x128xf32, #tpu.memory_space<vmem>>, %arg5: memref<3x128x128xf32, #tpu.memory_space<vmem>>, %arg6: memref<1x128xf32, #tpu.memory_space<vmem>>, %arg7: memref<1x128xf32, #tpu.memory_space<vmem>>, %arg8: memref<1x16x128xf32, #tpu.memory_space<vmem>>) attributes {dimension_semantics = [#tpu.dimension_semantics<parallel>], iteration_bounds = array<i64: 2>, scalar_prefetch = 0 : i64, scratch_operands = 0 : i64, tpu.core_type = #tpu.core_type<tc>, window_params = [{transform_indices = @transform_0, window_bounds = array<i64: 1, 16, 128>}, {pipeline_mode = #tpu.pipeline_mode<synchronous>, transform_indices = @transform_1, window_bounds = array<i64: 3, 128, 128>}, {pipeline_mode = #tpu.pipeline_mode<synchronous>, transform_indices = @transform_2, window_bounds = array<i64: 1, 128>}, {pipeline_mode = #tpu.pipeline_mode<synchronous>, transform_indices = @transform_3, window_bounds = array<i64: 1, 128>}, {pipeline_mode = #tpu.pipeline_mode<synchronous>, transform_indices = @transform_4, window_bounds = array<i64: 3, 128, 128>}, {pipeline_mode = #tpu.pipeline_mode<synchronous>, transform_indices = @transform_5, window_bounds = array<i64: 1, 128>}, {pipeline_mode = #tpu.pipeline_mode<synchronous>, transform_indices = @transform_6, window_bounds = array<i64: 1, 128>}, {transform_indices = @transform_7, window_bounds = array<i64: 1, 16, 128>}]} {
    %c0 = arith.constant 0 : index
    %c0_0 = arith.constant 0 : index
    %c0_1 = arith.constant 0 : index
    %0 = vector.load %arg1[%c0, %c0_0, %c0_1] : memref<1x16x128xf32, #tpu.memory_space<vmem>>, vector<1x16x128xf32>
    %1 = vector.shape_cast %0 : vector<1x16x128xf32> to vector<16x128xf32>
    %c0_2 = arith.constant 0 : index
    %c0_3 = arith.constant 0 : index
    %c0_4 = arith.constant 0 : index
    %2 = vector.load %arg2[%c0_2, %c0_3, %c0_4] : memref<3x128x128xf32, #tpu.memory_space<vmem>>, vector<1x128x128xf32>
    %3 = vector.shape_cast %2 : vector<1x128x128xf32> to vector<128x128xf32>
    %cst = arith.constant dense<0.000000e+00> : vector<16x128xf32>
    %4 = tpu.matmul %1, %3, %cst {dimension_numbers = #tpu.dot_dimension_numbers<[1], [0], [0], [1], [0, 0, 1, 1], [], []>} : vector<16x128xf32>, vector<128x128xf32>, vector<16x128xf32> -> vector<16x128xf32>
    %c1 = arith.constant 1 : index
    %c0_5 = arith.constant 0 : index
    %c0_6 = arith.constant 0 : index
    %5 = vector.load %arg2[%c1, %c0_5, %c0_6] : memref<3x128x128xf32, #tpu.memory_space<vmem>>, vector<1x128x128xf32>
    %6 = vector.shape_cast %5 : vector<1x128x128xf32> to vector<128x128xf32>
    %cst_7 = arith.constant dense<0.000000e+00> : vector<16x128xf32>
    %7 = tpu.matmul %1, %6, %cst_7 {dimension_numbers = #tpu.dot_dimension_numbers<[1], [0], [0], [1], [0, 0, 1, 1], [], []>} : vector<16x128xf32>, vector<128x128xf32>, vector<16x128xf32> -> vector<16x128xf32>
    %c2 = arith.constant 2 : index
    %c0_8 = arith.constant 0 : index
    %c0_9 = arith.constant 0 : index
    %8 = vector.load %arg2[%c2, %c0_8, %c0_9] : memref<3x128x128xf32, #tpu.memory_space<vmem>>, vector<1x128x128xf32>
    %9 = vector.shape_cast %8 : vector<1x128x128xf32> to vector<128x128xf32>
    %cst_10 = arith.constant dense<0.000000e+00> : vector<16x128xf32>
    %10 = tpu.matmul %1, %9, %cst_10 {dimension_numbers = #tpu.dot_dimension_numbers<[1], [0], [0], [1], [0, 0, 1, 1], [], []>} : vector<16x128xf32>, vector<128x128xf32>, vector<16x128xf32> -> vector<16x128xf32>
    %cst_11 = arith.constant 0.000000e+00 : f32
    %11 = vector.broadcast %cst_11 : f32 to vector<1x128xf32>
    %12 = vector.extract_strided_slice %4 {offsets = [0, 0], sizes = [15, 128], strides = [1, 1]} : vector<16x128xf32> to vector<15x128xf32>
    %13 = tpu.concatenate %11, %12 in 0 : vector<1x128xf32>, vector<15x128xf32> -> vector<16x128xf32>
    %14 = arith.addf %13, %7 : vector<16x128xf32>
    %15 = vector.extract_strided_slice %10 {offsets = [1, 0], sizes = [15, 128], strides = [1, 1]} : vector<16x128xf32> to vector<15x128xf32>
    %16 = tpu.concatenate %15, %11 in 0 : vector<15x128xf32>, vector<1x128xf32> -> vector<16x128xf32>
    %17 = arith.addf %14, %16 : vector<16x128xf32>
    %c0_12 = arith.constant 0 : index
    %c0_13 = arith.constant 0 : index
    %18 = vector.load %arg3[%c0_12, %c0_13] : memref<1x128xf32, #tpu.memory_space<vmem>>, vector<1x128xf32>
    %19 = vector.broadcast %18 : vector<1x128xf32> to vector<16x128xf32>
    %20 = arith.mulf %17, %19 : vector<16x128xf32>
    %c0_14 = arith.constant 0 : index
    %c0_15 = arith.constant 0 : index
    %21 = vector.load %arg4[%c0_14, %c0_15] : memref<1x128xf32, #tpu.memory_space<vmem>>, vector<1x128xf32>
    %22 = vector.broadcast %21 : vector<1x128xf32> to vector<16x128xf32>
    %23 = arith.addf %20, %22 : vector<16x128xf32>
    %cst_16 = arith.constant 0.000000e+00 : f32
    %24 = vector.broadcast %cst_16 : f32 to vector<16x128xf32>
    %25 = arith.maximumf %23, %24 : vector<16x128xf32>
    %c0_17 = arith.constant 0 : index
    %c0_18 = arith.constant 0 : index
    %c0_19 = arith.constant 0 : index
    %26 = vector.load %arg5[%c0_17, %c0_18, %c0_19] : memref<3x128x128xf32, #tpu.memory_space<vmem>>, vector<1x128x128xf32>
    %27 = vector.shape_cast %26 : vector<1x128x128xf32> to vector<128x128xf32>
    %cst_20 = arith.constant dense<0.000000e+00> : vector<16x128xf32>
    %28 = tpu.matmul %25, %27, %cst_20 {dimension_numbers = #tpu.dot_dimension_numbers<[1], [0], [0], [1], [0, 0, 1, 1], [], []>} : vector<16x128xf32>, vector<128x128xf32>, vector<16x128xf32> -> vector<16x128xf32>
    %c1_21 = arith.constant 1 : index
    %c0_22 = arith.constant 0 : index
    %c0_23 = arith.constant 0 : index
    %29 = vector.load %arg5[%c1_21, %c0_22, %c0_23] : memref<3x128x128xf32, #tpu.memory_space<vmem>>, vector<1x128x128xf32>
    %30 = vector.shape_cast %29 : vector<1x128x128xf32> to vector<128x128xf32>
    %cst_24 = arith.constant dense<0.000000e+00> : vector<16x128xf32>
    %31 = tpu.matmul %25, %30, %cst_24 {dimension_numbers = #tpu.dot_dimension_numbers<[1], [0], [0], [1], [0, 0, 1, 1], [], []>} : vector<16x128xf32>, vector<128x128xf32>, vector<16x128xf32> -> vector<16x128xf32>
    %c2_25 = arith.constant 2 : index
    %c0_26 = arith.constant 0 : index
    %c0_27 = arith.constant 0 : index
    %32 = vector.load %arg5[%c2_25, %c0_26, %c0_27] : memref<3x128x128xf32, #tpu.memory_space<vmem>>, vector<1x128x128xf32>
    %33 = vector.shape_cast %32 : vector<1x128x128xf32> to vector<128x128xf32>
    %cst_28 = arith.constant dense<0.000000e+00> : vector<16x128xf32>
    %34 = tpu.matmul %25, %33, %cst_28 {dimension_numbers = #tpu.dot_dimension_numbers<[1], [0], [0], [1], [0, 0, 1, 1], [], []>} : vector<16x128xf32>, vector<128x128xf32>, vector<16x128xf32> -> vector<16x128xf32>
    %cst_29 = arith.constant 0.000000e+00 : f32
    %35 = vector.broadcast %cst_29 : f32 to vector<1x128xf32>
    %36 = vector.extract_strided_slice %28 {offsets = [0, 0], sizes = [15, 128], strides = [1, 1]} : vector<16x128xf32> to vector<15x128xf32>
    %37 = tpu.concatenate %35, %36 in 0 : vector<1x128xf32>, vector<15x128xf32> -> vector<16x128xf32>
    %38 = arith.addf %37, %31 : vector<16x128xf32>
    %39 = vector.extract_strided_slice %34 {offsets = [1, 0], sizes = [15, 128], strides = [1, 1]} : vector<16x128xf32> to vector<15x128xf32>
    %40 = tpu.concatenate %39, %35 in 0 : vector<15x128xf32>, vector<1x128xf32> -> vector<16x128xf32>
    %41 = arith.addf %38, %40 : vector<16x128xf32>
    %c0_30 = arith.constant 0 : index
    %c0_31 = arith.constant 0 : index
    %42 = vector.load %arg6[%c0_30, %c0_31] : memref<1x128xf32, #tpu.memory_space<vmem>>, vector<1x128xf32>
    %43 = vector.broadcast %42 : vector<1x128xf32> to vector<16x128xf32>
    %44 = arith.mulf %41, %43 : vector<16x128xf32>
    %c0_32 = arith.constant 0 : index
    %c0_33 = arith.constant 0 : index
    %45 = vector.load %arg7[%c0_32, %c0_33] : memref<1x128xf32, #tpu.memory_space<vmem>>, vector<1x128xf32>
    %46 = vector.broadcast %45 : vector<1x128xf32> to vector<16x128xf32>
    %47 = arith.addf %44, %46 : vector<16x128xf32>
    %48 = arith.addf %47, %1 : vector<16x128xf32>
    %cst_34 = arith.constant 0.000000e+00 : f32
    %49 = vector.broadcast %cst_34 : f32 to vector<16x128xf32>
    %50 = arith.maximumf %48, %49 : vector<16x128xf32>
    %c0_35 = arith.constant 0 : index
    %c0_36 = arith.constant 0 : index
    %c0_37 = arith.constant 0 : index
    %51 = vector.load %arg8[%c0_35, %c0_36, %c0_37] : memref<1x16x128xf32, #tpu.memory_space<vmem>>, vector<1x16x128xf32>
    %52 = vector.shape_cast %51 : vector<1x16x128xf32> to vector<16x128xf32>
    %53 = vector.shape_cast %50 : vector<16x128xf32> to vector<1x16x128xf32>
    tpu.vector_store %arg8[%c0_35, %c0_36, %c0_37], %53 {strides = array<i32>} : memref<1x16x128xf32, #tpu.memory_space<vmem>>, vector<1x16x128xf32>,
    return
  }
  func.func @transform_0(%arg0: i32) -> (i32, i32, i32) {
    %c0_i32 = arith.constant 0 : i32
    %c0_i32_0 = arith.constant 0 : i32
    %c0_i32_1 = arith.constant 0 : i32
    return %arg0, %c0_i32, %c0_i32_0 : i32, i32, i32
  }
  func.func @transform_1(%arg0: i32) -> (i32, i32, i32) {
    %c0_i32 = arith.constant 0 : i32
    %c0_i32_0 = arith.constant 0 : i32
    %c0_i32_1 = arith.constant 0 : i32
    %c0_i32_2 = arith.constant 0 : i32
    return %c0_i32, %c0_i32_0, %c0_i32_1 : i32, i32, i32
  }
  func.func @transform_2(%arg0: i32) -> (i32, i32) {
    %c0_i32 = arith.constant 0 : i32
    %c0_i32_0 = arith.constant 0 : i32
    %c0_i32_1 = arith.constant 0 : i32
    return %c0_i32, %c0_i32_0 : i32, i32
  }
  func.func @transform_3(%arg0: i32) -> (i32, i32) {
    %c0_i32 = arith.constant 0 : i32
    %c0_i32_0 = arith.constant 0 : i32
    %c0_i32_1 = arith.constant 0 : i32
    return %c0_i32, %c0_i32_0 : i32, i32
  }
  func.func @transform_4(%arg0: i32) -> (i32, i32, i32) {
    %c0_i32 = arith.constant 0 : i32
    %c0_i32_0 = arith.constant 0 : i32
    %c0_i32_1 = arith.constant 0 : i32
    %c0_i32_2 = arith.constant 0 : i32
    return %c0_i32, %c0_i32_0, %c0_i32_1 : i32, i32, i32
  }
  func.func @transform_5(%arg0: i32) -> (i32, i32) {
    %c0_i32 = arith.constant 0 : i32
    %c0_i32_0 = arith.constant 0 : i32
    %c0_i32_1 = arith.constant 0 : i32
    return %c0_i32, %c0_i32_0 : i32, i32
  }
  func.func @transform_6(%arg0: i32) -> (i32, i32) {
    %c0_i32 = arith.constant 0 : i32
    %c0_i32_0 = arith.constant 0 : i32
    %c0_i32_1 = arith.constant 0 : i32
    return %c0_i32, %c0_i32_0 : i32, i32
  }
  func.func @transform_7(%arg0: i32) -> (i32, i32, i32) {
    %c0_i32 = arith.constant 0 : i32
    %c0_i32_0 = arith.constant 0 : i32
    %c0_i32_1 = arith.constant 0 : i32
    return %arg0, %c0_i32, %c0_i32_0 : i32, i32, i32
  }
}

</mosaic_0001>

<llo_original>
// kernel: tpu_custom_call.1
$region0: #{tpu_custom_call.1}
  #allocation0 [shape = 'u32[]', space=smem, size = 0x4, offset = 0x4, fixed_abs, tag = 'smem constant byte address 0x4 - core index']
  #allocation1 [shape = 'u32[72,128]{1,0:T(1,128)}', space=vmem, size = 0x9000, scoped, tag = 'internal scratch']
  %s0 = inlined_call_operand.hbm [shape: f32[2,16,128], index: 0, kind: input, shape index: {}]
  %s1 = inlined_call_operand.hbm [shape: f32[3,128,128], index: 1, kind: input, shape index: {}]
  %s2 = inlined_call_operand.vmem [shape: f32[1,128], index: 2, kind: input, shape index: {}]
  %s3 = inlined_call_operand.vmem [shape: f32[1,128], index: 3, kind: input, shape index: {}]
  %s4 = inlined_call_operand.hbm [shape: f32[3,128,128], index: 4, kind: input, shape index: {}]
  %s5 = inlined_call_operand.vmem [shape: f32[1,128], index: 5, kind: input, shape index: {}]
  %s6 = inlined_call_operand.vmem [shape: f32[1,128], index: 6, kind: input, shape index: {}]
  %s7 = inlined_call_operand.hbm [shape: f32[2,16,128], index: 7, kind: output, shape index: {}]
  %s8 = sld [smem:[#allocation0]]
  $region73: #{tpu_custom_call.1} parent=0
    _
  %s10 = ssub.s32 1, %s8
  %s11 = scalar_select 0, %s10, %s8
  $region1: #{tpu_custom_call.1} parent=0
    #allocation2 [shape = 'u8[16384]{0}', space=vmem, size = 0x4000, scoped, tag = 'input window, operand 0']
    #allocation3 [shape = 's32[2]{0}', space=sflag, size = 0x8, scoped, tag = 'scoped memory for tpu_custom_call.1']
    #allocation4 [shape = 's32[2]{0}', space=sflag, size = 0x8, scoped, tag = 'scoped memory for tpu_custom_call.1']
    #allocation5 [shape = 'u8[196608]{0}', space=vmem, size = 0x30000, scoped, tag = 'input window, operand 1, single buffered']
    #allocation6 [shape = 's32[1]{0}', space=sflag, size = 0x4, scoped, tag = 'scoped memory for tpu_custom_call.1']
    #allocation7 [shape = 'u8[196608]{0}', space=vmem, size = 0x30000, scoped, tag = 'input window, operand 4, single buffered']
    #allocation8 [shape = 'u8[16384]{0}', space=vmem, size = 0x4000, scoped, tag = 'output window, operand 0']
    %12 = vsyncpa [#allocation3], 0
    %s13 = scalar_lea.sflag [#allocation3], 1
    %14 = vsyncpa %s13, 0
    %15 = vsyncpa [#allocation6], 0
    %16 = vsyncpa [#allocation4], 0
    %s17 = scalar_lea.sflag [#allocation4], 1
    %18 = vsyncpa %s17, 0
    loop: start=0, step=1, limit=4
    $region2: #{tpu_custom_call.1} parent=1 // loop_pre_header
      _
    $region3: #{tpu_custom_call.1} parent=1 // loop_header
      %s20 = sphi 0, %s24
      %p21 = scmp.ge.s32.totalorder %s20, 4
      %s30 = sphi 0, %s32
      %s33 = sphi 0, %s30
      %s34 = sphi 0, %s33
      %s50 = sphi 0, %s34
      %s54 = sphi 0, %s54
      %s56 = sphi 0, %s54
      %s57 = sphi 0, %s56
      %s71 = sphi 0, %s57
      %s75 = sphi 0, %s75
      %s77 = sphi 0, %s75
      %s78 = sphi 0, %s77
      %s92 = sphi 0, %s78
      %s96 = sphi 0, %s96
      %s98 = sphi 0, %s96
      %s99 = sphi 0, %s98
      %s113 = sphi 0, %s99
      %s117 = sphi 0, %s117
      %s119 = sphi 0, %s117
      %s120 = sphi 0, %s119
      %s134 = sphi 0, %s120
      %s138 = sphi 0, %s138
      %s140 = sphi 0, %s138
      %s141 = sphi 0, %s140
      %s155 = sphi 0, %s141
      %s159 = sphi 0, %s159
      %s161 = sphi 0, %s159
      %s162 = sphi 0, %s161
      %s176 = sphi 0, %s162
      %s182 = sphi 0, %s184
      %s185 = sphi 0, %s182
      %s186 = sphi 0, %s185
      %s202 = sphi 0, %s186
    $region4: #{tpu_custom_call.1} parent=1 // loop_header_branch
      %23 = sbr.rel (%p21) target = $region8
    $region5: #{tpu_custom_call.1} parent=1 // loop_body
      %s25 = ssub.s32 %s20, 1
      %s26 = ssub.s32 %s20, 2
      %s27 = sadd.s32 %s20, 1
      %s28 = ssub.s32 %s20, %s27
      %p29 = scmp.eq.s32.totalorder %s28, 0
      %s31 = sadd.s32 %s30, 1
      %s32 = scalar_select %p29, %s30, %s31
      %p35 = pneg %p29
      %p36 = scmp.eq.s32.totalorder %s20, 1
      %p37 = por %p35, %p36
      %p38 = scmp.ne.s32.totalorder %s30, %s33
      %p39 = scmp.eq.s32.totalorder %s20, 0
      %p40 = por %p38, %p39
      %p41 = scmp.ne.s32.totalorder %s30, %s33
      %p42 = scmp.eq.s32.totalorder %s25, 1
      %p43 = por %p41, %p42
      %p44 = scmp.ne.s32.totalorder %s33, %s34
      %p45 = scmp.eq.s32.totalorder %s25, 0
      %p46 = por %p44, %p45
      %p47 = scmp.ne.s32.totalorder %s33, %s34
      %p48 = scmp.eq.s32.totalorder %s26, 1
      %p49 = por %p47, %p48
      %p51 = scmp.ne.s32.totalorder %s34, %s50
      %p52 = scmp.eq.s32.totalorder %s26, 0
      %p53 = por %p51, %p52
      %s55 = sadd.s32 %s54, 1
      %p58 = scmp.eq.s32.totalorder %s20, 1
      %p59 = scmp.ne.s32.totalorder %s54, %s56
      %p60 = scmp.eq.s32.totalorder %s20, 0
      %p61 = por %p59, %p60
      %p62 = scmp.ne.s32.totalorder %s54, %s56
      %p63 = scmp.eq.s32.totalorder %s25, 1
      %p64 = por %p62, %p63
      %p65 = scmp.ne.s32.totalorder %s56, %s57
      %p66 = scmp.eq.s32.totalorder %s25, 0
      %p67 = por %p65, %p66
      %p68 = scmp.ne.s32.totalorder %s56, %s57
      %p69 = scmp.eq.s32.totalorder %s26, 1
      %p70 = por %p68, %p69
      %p72 = scmp.ne.s32.totalorder %s57, %s71
      %p73 = scmp.eq.s32.totalorder %s26, 0
      %p74 = por %p72, %p73
      %s76 = sadd.s32 %s75, 1
      %p79 = scmp.eq.s32.totalorder %s20, 1
      %p80 = scmp.ne.s32.totalorder %s75, %s77
      %p81 = scmp.eq.s32.totalorder %s20, 0
      %p82 = por %p80, %p81
      %p83 = scmp.ne.s32.totalorder %s75, %s77
      %p84 = scmp.eq.s32.totalorder %s25, 1
      %p85 = por %p83, %p84
      %p86 = scmp.ne.s32.totalorder %s77, %s78
      %p87 = scmp.eq.s32.totalorder %s25, 0
      %p88 = por %p86, %p87
      %p89 = scmp.ne.s32.totalorder %s77, %s78
      %p90 = scmp.eq.s32.totalorder %s26, 1
      %p91 = por %p89, %p90
      %p93 = scmp.ne.s32.totalorder %s78, %s92
      %p94 = scmp.eq.s32.totalorder %s26, 0
      %p95 = por %p93, %p94
      %s97 = sadd.s32 %s96, 1
      %p100 = scmp.eq.s32.totalorder %s20, 1
      %p101 = scmp.ne.s32.totalorder %s96, %s98
      %p102 = scmp.eq.s32.totalorder %s20, 0
      %p103 = por %p101, %p102
      %p104 = scmp.ne.s32.totalorder %s96, %s98
      %p105 = scmp.eq.s32.totalorder %s25, 1
      %p106 = por %p104, %p105
      %p107 = scmp.ne.s32.totalorder %s98, %s99
      %p108 = scmp.eq.s32.totalorder %s25, 0
      %p109 = por %p107, %p108
      %p110 = scmp.ne.s32.totalorder %s98, %s99
      %p111 = scmp.eq.s32.totalorder %s26, 1
      %p112 = por %p110, %p111
      %p114 = scmp.ne.s32.totalorder %s99, %s113
      %p115 = scmp.eq.s32.totalorder %s26, 0
      %p116 = por %p114, %p115
      %s118 = sadd.s32 %s117, 1
      %p121 = scmp.eq.s32.totalorder %s20, 1
      %p122 = scmp.ne.s32.totalorder %s117, %s119
      %p123 = scmp.eq.s32.totalorder %s20, 0
      %p124 = por %p122, %p123
      %p125 = scmp.ne.s32.totalorder %s117, %s119
      %p126 = scmp.eq.s32.totalorder %s25, 1
      %p127 = por %p125, %p126
      %p128 = scmp.ne.s32.totalorder %s119, %s120
      %p129 = scmp.eq.s32.totalorder %s25, 0
      %p130 = por %p128, %p129
      %p131 = scmp.ne.s32.totalorder %s119, %s120
      %p132 = scmp.eq.s32.totalorder %s26, 1
      %p133 = por %p131, %p132
      %p135 = scmp.ne.s32.totalorder %s120, %s134
      %p136 = scmp.eq.s32.totalorder %s26, 0
      %p137 = por %p135, %p136
      %s139 = sadd.s32 %s138, 1
      %p142 = scmp.eq.s32.totalorder %s20, 1
      %p143 = scmp.ne.s32.totalorder %s138, %s140
      %p144 = scmp.eq.s32.totalorder %s20, 0
      %p145 = por %p143, %p144
      %p146 = scmp.ne.s32.totalorder %s138, %s140
      %p147 = scmp.eq.s32.totalorder %s25, 1
      %p148 = por %p146, %p147
      %p149 = scmp.ne.s32.totalorder %s140, %s141
      %p150 = scmp.eq.s32.totalorder %s25, 0
      %p151 = por %p149, %p150
      %p152 = scmp.ne.s32.totalorder %s140, %s141
      %p153 = scmp.eq.s32.totalorder %s26, 1
      %p154 = por %p152, %p153
      %p156 = scmp.ne.s32.totalorder %s141, %s155
      %p157 = scmp.eq.s32.totalorder %s26, 0
      %p158 = por %p156, %p157
      %s160 = sadd.s32 %s159, 1
      %p163 = scmp.eq.s32.totalorder %s20, 1
      %p164 = scmp.ne.s32.totalorder %s159, %s161
      %p165 = scmp.eq.s32.totalorder %s20, 0
      %p166 = por %p164, %p165
      %p167 = scmp.ne.s32.totalorder %s159, %s161
      %p168 = scmp.eq.s32.totalorder %s25, 1
      %p169 = por %p167, %p168
      %p170 = scmp.ne.s32.totalorder %s161, %s162
      %p171 = scmp.eq.s32.totalorder %s25, 0
      %p172 = por %p170, %p171
      %p173 = scmp.ne.s32.totalorder %s161, %s162
      %p174 = scmp.eq.s32.totalorder %s26, 1
      %p175 = por %p173, %p174
      %p177 = scmp.ne.s32.totalorder %s162, %s176
      %p178 = scmp.eq.s32.totalorder %s26, 0
      %p179 = por %p177, %p178
      %s180 = ssub.s32 %s20, %s27
      %p181 = scmp.eq.s32.totalorder %s180, 0
      %s183 = sadd.s32 %s182, 1
      %s184 = scalar_select %p181, %s182, %s183
      %p187 = pneg %p181
      %p188 = scmp.eq.s32.totalorder %s20, 1
      %p189 = por %p187, %p188
      %p190 = scmp.ne.s32.totalorder %s182, %s185
      %p191 = scmp.eq.s32.totalorder %s20, 0
      %p192 = por %p190, %p191
      %p193 = scmp.ne.s32.totalorder %s182, %s185
      %p194 = scmp.eq.s32.totalorder %s25, 1
      %p195 = por %p193, %p194
      %p196 = scmp.ne.s32.totalorder %s185, %s186
      %p197 = scmp.eq.s32.totalorder %s25, 0
      %p198 = por %p196, %p197
      %p199 = scmp.ne.s32.totalorder %s185, %s186
      %p200 = scmp.eq.s32.totalorder %s26, 1
      %p201 = por %p199, %p200
      %p203 = scmp.ne.s32.totalorder %s186, %s202
      %p204 = scmp.eq.s32.totalorder %s26, 0
      %p205 = por %p203, %p204
      %p206 = scmp.le.s32.totalorder 1, %s20
      %p207 = scmp.lt.s32.totalorder %s20, 3
      %p208 = pnand %p206, %p207
      %p209 = pneg %p208
      // Predicated region
      $region9: #{tpu_custom_call.1} parent=5 // pred_check
        _
      $region10: #{tpu_custom_call.1} parent=5 // pred_check_branch
        %211 = sbr.rel (%p208) target = $region12
      $region11: #{tpu_custom_call.1} parent=5 // pred_region
        %s212 = ssub.s32 %s20, 1
        // Predicated region
        $region13: #{tpu_custom_call.1} parent=11 // pred_check
          %p213 = pneg %p67
        $region14: #{tpu_custom_call.1} parent=11 // pred_check_branch
          %215 = sbr.rel (%p213) target = $region16
        $region15: #{tpu_custom_call.1} parent=11 // pred_region
          %217 = vsyncadd [#allocation6], 0
          %s218 = sshll.u32 %s1, 4
          %s219 = int_to_ptr.hbm [resolvable:$true] %s218
          %s220 = sshll.u32 [#allocation5], 4
          %s221 = int_to_ptr.vmem [resolvable:$true] %s220
          %226 = dma.hbm_to_vmem [thread:$0]  %s219, 6144, %s221, [#allocation6], 128, 128, 8
        $region16: #{tpu_custom_call.1} parent=11 // pred_fallthru
          _
        // Predicated region
        $region17: #{tpu_custom_call.1} parent=11 // pred_check
          %p227 = pneg %p88
        $region18: #{tpu_custom_call.1} parent=11 // pred_check_branch
          %229 = sbr.rel (%p227) target = $region20
        $region19: #{tpu_custom_call.1} parent=11 // pred_region
          _
        $region20: #{tpu_custom_call.1} parent=11 // pred_fallthru
          _
        // Predicated region
        $region21: #{tpu_custom_call.1} parent=11 // pred_check
          %p230 = pneg %p109
        $region22: #{tpu_custom_call.1} parent=11 // pred_check_branch
          %232 = sbr.rel (%p230) target = $region24
        $region23: #{tpu_custom_call.1} parent=11 // pred_region
          _
        $region24: #{tpu_custom_call.1} parent=11 // pred_fallthru
          _
        // Predicated region
        $region25: #{tpu_custom_call.1} parent=11 // pred_check
          %p233 = pneg %p130
        $region26: #{tpu_custom_call.1} parent=11 // pred_check_branch
          %235 = sbr.rel (%p233) target = $region28
        $region27: #{tpu_custom_call.1} parent=11 // pred_region
          %237 = vsyncadd [#allocation6], 0
          %s238 = sshll.u32 %s4, 4
          %s239 = int_to_ptr.hbm [resolvable:$true] %s238
          %s240 = sshll.u32 [#allocation7], 4
          %s241 = int_to_ptr.vmem [resolvable:$true] %s240
          %246 = dma.hbm_to_vmem [thread:$0]  %s239, 6144, %s241, [#allocation6], 128, 128, 8
        $region28: #{tpu_custom_call.1} parent=11 // pred_fallthru
          _
        // Predicated region
        $region29: #{tpu_custom_call.1} parent=11 // pred_check
          %p247 = pneg %p151
        $region30: #{tpu_custom_call.1} parent=11 // pred_check_branch
          %249 = sbr.rel (%p247) target = $region32
        $region31: #{tpu_custom_call.1} parent=11 // pred_region
          _
        $region32: #{tpu_custom_call.1} parent=11 // pred_fallthru
          _
        // Predicated region
        $region33: #{tpu_custom_call.1} parent=11 // pred_check
          %p250 = pneg %p172
        $region34: #{tpu_custom_call.1} parent=11 // pred_check_branch
          %252 = sbr.rel (%p250) target = $region36
        $region35: #{tpu_custom_call.1} parent=11 // pred_region
          _
        $region36: #{tpu_custom_call.1} parent=11 // pred_fallthru
          _
      $region12: #{tpu_custom_call.1} parent=5 // pred_fallthru
        _
      %p253 = scmp.lt.s32.totalorder %s20, 2
      // Predicated region
      $region37: #{tpu_custom_call.1} parent=5 // pred_check
        %p254 = pneg %p253
      $region38: #{tpu_custom_call.1} parent=5 // pred_check_branch
        %256 = sbr.rel (%p254) target = $region40
      $region39: #{tpu_custom_call.1} parent=5 // pred_region
        // Predicated region
        $region41: #{tpu_custom_call.1} parent=39 // pred_check
          %p257 = pneg %p40
        $region42: #{tpu_custom_call.1} parent=39 // pred_check_branch
          %259 = sbr.rel (%p257) target = $region44
        $region43: #{tpu_custom_call.1} parent=39 // pred_region
          %s260 = sand.u32 %s30, 1
          %s261 = scalar_lea.sflag [#allocation3], %s260
          %s262 = sand.u32 %s30, 1
          %s263 = smul.addr %s262, 16
          %s264 = scalar_lea.vmem [#allocation2], %s263
          %266 = vsyncadd %s261, 0
          %s267 = smul.addr %s20, 2
          %s268 = smul.addr %s267, 8
          %s269 = scalar_lea.hbm %s0, %s268
          %s270 = sshll.u32 %s269, 4
          %s271 = int_to_ptr.hbm [resolvable:$true] %s270
          %s272 = sshll.u32 %s264, 4
          %s273 = int_to_ptr.vmem [resolvable:$true] %s272
          %278 = dma.hbm_to_vmem [thread:$0]  %s271, 256, %s273, %s261, 128, 128, 8
        $region44: #{tpu_custom_call.1} parent=39 // pred_fallthru
          _
      $region40: #{tpu_custom_call.1} parent=5 // pred_fallthru
        _
      %p279 = scmp.le.s32.totalorder 1, %s20
      %p280 = scmp.lt.s32.totalorder %s20, 3
      %p281 = pnand %p279, %p280
      %p282 = pneg %p281
      // Predicated region
      $region45: #{tpu_custom_call.1} parent=5 // pred_check
        _
      $region46: #{tpu_custom_call.1} parent=5 // pred_check_branch
        %284 = sbr.rel (%p281) target = $region48
      $region47: #{tpu_custom_call.1} parent=5 // pred_region
        %s285 = ssub.s32 %s20, 1
        %s286 = sand.u32 %s33, 1
        %s287 = scalar_lea.sflag [#allocation3], %s286
        %s288 = sand.u32 %s33, 1
        %s289 = smul.addr %s288, 16
        %s290 = scalar_lea.vmem [#allocation2], %s289
        // Predicated region
        $region49: #{tpu_custom_call.1} parent=47 // pred_check
          %p291 = pneg %p46
        $region50: #{tpu_custom_call.1} parent=47 // pred_check_branch
          %293 = sbr.rel (%p291) target = $region52
        $region51: #{tpu_custom_call.1} parent=47 // pred_region
          %295 = dma.done %s287, 256
        $region52: #{tpu_custom_call.1} parent=47 // pred_fallthru
          _
        // Predicated region
        $region53: #{tpu_custom_call.1} parent=47 // pred_check
          %p296 = pneg %p67
        $region54: #{tpu_custom_call.1} parent=47 // pred_check_branch
          %298 = sbr.rel (%p296) target = $region56
        $region55: #{tpu_custom_call.1} parent=47 // pred_region
          %300 = dma.done [#allocation6], 6144
        $region56: #{tpu_custom_call.1} parent=47 // pred_fallthru
          _
        // Predicated region
        $region57: #{tpu_custom_call.1} parent=47 // pred_check
          %p301 = pneg %p130
        $region58: #{tpu_custom_call.1} parent=47 // pred_check_branch
          %303 = sbr.rel (%p301) target = $region60
        $region59: #{tpu_custom_call.1} parent=47 // pred_region
          %305 = dma.done [#allocation6], 6144
        $region60: #{tpu_custom_call.1} parent=47 // pred_fallthru
          _
        %s306 = sand.u32 %s33, 1
        %s307 = scalar_lea.sflag [#allocation3], %s306
        %s308 = sand.u32 %s33, 1
        %s309 = smul.addr %s308, 16
        %s310 = scalar_lea.vmem [#allocation2], %s309
        %p311 = pneg %p46
        %p312 = pneg %p43
        %p313 = pneg %p67
        %p314 = pneg %p64
        %p315 = pneg %p88
        %p316 = pneg %p85
        %p317 = pneg %p109
        %p318 = pneg %p106
        %p319 = pneg %p130
        %p320 = pneg %p127
        %p321 = pneg %p151
        %p322 = pneg %p148
        %p323 = pneg %p172
        %p324 = pneg %p169
        %p325 = pneg %p198
        %p326 = pneg %p195
        %s327 = sand.u32 %s185, 1
        %s328 = scalar_lea.sflag [#allocation4], %s327
        %s329 = sand.u32 %s185, 1
        %s330 = smul.addr %s329, 16
        %s331 = scalar_lea.vmem [#allocation8], %s330
        %v332 = vld [vmem:[%s290] sm:$0xff]
        %v333 = vld [vmem:[%s290 + $0x8] sm:$0xff]
        %v334 = vld [vmem:[#allocation5] sm:$0xff]
        %v335 = vld [vmem:[#allocation5 + $0x8] sm:$0xff]
        %v336 = vld [vmem:[#allocation5 + $0x10] sm:$0xff]
        %v337 = vld [vmem:[#allocation5 + $0x18] sm:$0xff]
        %v338 = vld [vmem:[#allocation5 + $0x20] sm:$0xff]
        %v339 = vld [vmem:[#allocation5 + $0x28] sm:$0xff]
        %v340 = vld [vmem:[#allocation5 + $0x30] sm:$0xff]
        %v341 = vld [vmem:[#allocation5 + $0x38] sm:$0xff]
        %v342 = vld [vmem:[#allocation5 + $0x40] sm:$0xff]
        %v343 = vld [vmem:[#allocation5 + $0x48] sm:$0xff]
        %v344 = vld [vmem:[#allocation5 + $0x50] sm:$0xff]
        %v345 = vld [vmem:[#allocation5 + $0x58] sm:$0xff]
        %v346 = vld [vmem:[#allocation5 + $0x60] sm:$0xff]
        %v347 = vld [vmem:[#allocation5 + $0x68] sm:$0xff]
        %v348 = vld [vmem:[#allocation5 + $0x70] sm:$0xff]
        %v349 = vld [vmem:[#allocation5 + $0x78] sm:$0xff]
        %350 = vmatpush.msra.mxu0 %v349
        %351 = vmatpush.msra.mxu0 %v348
        %352 = vmatpush.msra.mxu0 %v347
        %353 = vmatpush.msra.mxu0 %v346
        %354 = vmatpush.msra.mxu0 %v345
        %355 = vmatpush.msra.mxu0 %v344
        %356 = vmatpush.msra.mxu0 %v343
        %357 = vmatpush.msra.mxu0 %v342
        %358 = vmatpush.msra.mxu0 %v341
        %359 = vmatpush.msra.mxu0 %v340
        %360 = vmatpush.msra.mxu0 %v339
        %361 = vmatpush.msra.mxu0 %v338
        %362 = vmatpush.msra.mxu0 %v337
        %363 = vmatpush.msra.mxu0 %v336
        %364 = vmatpush.msra.mxu0 %v335
        %365 = vmatpush.msra.mxu0 %v334
        %366 = vmatmul.f32.gmra.mxu0 %v332
        %v367 = vpop.f32.mrf.mxu0
        %v368 = vadd.f32 0.0, %v367
        %369 = vmatmul.f32.gmra.mxu0 %v333
        %v370 = vpop.f32.mrf.mxu0
        %v371 = vadd.f32 0.0, %v370
        %372 = vdwg.mxu0
        %s373 = scalar_lea.vmem [#allocation5], 128
        %v374 = vld [vmem:[%s373] sm:$0xff]
        %v375 = vld [vmem:[%s373 + $0x8] sm:$0xff]
        %v376 = vld [vmem:[%s373 + $0x10] sm:$0xff]
        %v377 = vld [vmem:[%s373 + $0x18] sm:$0xff]
        %v378 = vld [vmem:[%s373 + $0x20] sm:$0xff]
        %v379 = vld [vmem:[%s373 + $0x28] sm:$0xff]
        %v380 = vld [vmem:[%s373 + $0x30] sm:$0xff]
        %v381 = vld [vmem:[%s373 + $0x38] sm:$0xff]
        %v382 = vld [vmem:[%s373 + $0x40] sm:$0xff]
        %v383 = vld [vmem:[%s373 + $0x48] sm:$0xff]
        %v384 = vld [vmem:[%s373 + $0x50] sm:$0xff]
        %v385 = vld [vmem:[%s373 + $0x58] sm:$0xff]
        %v386 = vld [vmem:[%s373 + $0x60] sm:$0xff]
        %v387 = vld [vmem:[%s373 + $0x68] sm:$0xff]
        %v388 = vld [vmem:[%s373 + $0x70] sm:$0xff]
        %v389 = vld [vmem:[%s373 + $0x78] sm:$0xff]
        %390 = vmatpush.msra.mxu0 %v389
        %391 = vmatpush.msra.mxu0 %v388
        %392 = vmatpush.msra.mxu0 %v387
        %393 = vmatpush.msra.mxu0 %v386
        %394 = vmatpush.msra.mxu0 %v385
        %395 = vmatpush.msra.mxu0 %v384
        %396 = vmatpush.msra.mxu0 %v383
        %397 = vmatpush.msra.mxu0 %v382
        %398 = vmatpush.msra.mxu0 %v381
        %399 = vmatpush.msra.mxu0 %v380
        %400 = vmatpush.msra.mxu0 %v379
        %401 = vmatpush.msra.mxu0 %v378
        %402 = vmatpush.msra.mxu0 %v377
        %403 = vmatpush.msra.mxu0 %v376
        %404 = vmatpush.msra.mxu0 %v375
        %405 = vmatpush.msra.mxu0 %v374
        %406 = vmatmul.f32.gmra.mxu0 %v332
        %v407 = vpop.f32.mrf.mxu0
        %v408 = vadd.f32 0.0, %v407
        %409 = vmatmul.f32.gmra.mxu0 %v333
        %v410 = vpop.f32.mrf.mxu0
        %v411 = vadd.f32 0.0, %v410
        %412 = vdwg.mxu0
        %s413 = scalar_lea.vmem [#allocation5], 256
        %v414 = vld [vmem:[%s413] sm:$0xff]
        %v415 = vld [vmem:[%s413 + $0x8] sm:$0xff]
        %v416 = vld [vmem:[%s413 + $0x10] sm:$0xff]
        %v417 = vld [vmem:[%s413 + $0x18] sm:$0xff]
        %v418 = vld [vmem:[%s413 + $0x20] sm:$0xff]
        %v419 = vld [vmem:[%s413 + $0x28] sm:$0xff]
        %v420 = vld [vmem:[%s413 + $0x30] sm:$0xff]
        %v421 = vld [vmem:[%s413 + $0x38] sm:$0xff]
        %v422 = vld [vmem:[%s413 + $0x40] sm:$0xff]
        %v423 = vld [vmem:[%s413 + $0x48] sm:$0xff]
        %v424 = vld [vmem:[%s413 + $0x50] sm:$0xff]
        %v425 = vld [vmem:[%s413 + $0x58] sm:$0xff]
        %v426 = vld [vmem:[%s413 + $0x60] sm:$0xff]
        %v427 = vld [vmem:[%s413 + $0x68] sm:$0xff]
        %v428 = vld [vmem:[%s413 + $0x70] sm:$0xff]
        %v429 = vld [vmem:[%s413 + $0x78] sm:$0xff]
        %430 = vmatpush.msra.mxu0 %v429
        %431 = vmatpush.msra.mxu0 %v428
        %432 = vmatpush.msra.mxu0 %v427
        %433 = vmatpush.msra.mxu0 %v426
        %434 = vmatpush.msra.mxu0 %v425
        %435 = vmatpush.msra.mxu0 %v424
        %436 = vmatpush.msra.mxu0 %v423
        %437 = vmatpush.msra.mxu0 %v422
        %438 = vmatpush.msra.mxu0 %v421
        %439 = vmatpush.msra.mxu0 %v420
        %440 = vmatpush.msra.mxu0 %v419
        %441 = vmatpush.msra.mxu0 %v418
        %442 = vmatpush.msra.mxu0 %v417
        %443 = vmatpush.msra.mxu0 %v416
        %444 = vmatpush.msra.mxu0 %v415
        %445 = vmatpush.msra.mxu0 %v414
        %446 = vmatmul.f32.gmra.mxu0 %v332
        %v447 = vpop.f32.mrf.mxu0
        %v448 = vadd.f32 0.0, %v447
        %449 = vmatmul.f32.gmra.mxu0 %v333
        %v450 = vpop.f32.mrf.mxu0
        %v451 = vadd.f32 0.0, %v450
        %452 = vdwg.mxu0
        %vm455 = vcmask 1040384
        %v456 = vrot.slane %v368, 7
        %v457 = vrot.slane %v371, 7
        %v458 = vsel %vm455, %v456, %v457
        %v461 = vsel %vm455, 0.0, %v456
        %v462 = vadd.f32 %v461, %v408
        %v463 = vadd.f32 %v458, %v411
        %vm466 = vcmask 1046528
        %v467 = vrot.slane %v448, 1
        %v468 = vrot.slane %v451, 1
        %v469 = vsel %vm466, %v467, %v468
        %v472 = vsel %vm466, %v468, 0.0
        %v473 = vadd.f32 %v462, %v469
        %v474 = vadd.f32 %v463, %v472
        %v475 = vld [vmem:[%s2] sm:$0x1]
        %v477 = vperm.slane %v475, 0
        %v479 = vmul.f32 %v473, %v477
        %v480 = vmul.f32 %v474, %v477
        %v481 = vld [vmem:[%s3] sm:$0x1]
        %v483 = vperm.slane %v481, 0
        %v485 = vadd.f32 %v479, %v483
        %v486 = vadd.f32 %v480, %v483
        %v487 = vmax.f32 %v485, 0.0
        %v488 = vmax.f32 %v486, 0.0
        %v489 = vld [vmem:[#allocation7] sm:$0xff]
        %v490 = vld [vmem:[#allocation7 + $0x8] sm:$0xff]
        %v491 = vld [vmem:[#allocation7 + $0x10] sm:$0xff]
        %v492 = vld [vmem:[#allocation7 + $0x18] sm:$0xff]
        %v493 = vld [vmem:[#allocation7 + $0x20] sm:$0xff]
        %v494 = vld [vmem:[#allocation7 + $0x28] sm:$0xff]
        %v495 = vld [vmem:[#allocation7 + $0x30] sm:$0xff]
        %v496 = vld [vmem:[#allocation7 + $0x38] sm:$0xff]
        %v497 = vld [vmem:[#allocation7 + $0x40] sm:$0xff]
        %v498 = vld [vmem:[#allocation7 + $0x48] sm:$0xff]
        %v499 = vld [vmem:[#allocation7 + $0x50] sm:$0xff]
        %v500 = vld [vmem:[#allocation7 + $0x58] sm:$0xff]
        %v501 = vld [vmem:[#allocation7 + $0x60] sm:$0xff]
        %v502 = vld [vmem:[#allocation7 + $0x68] sm:$0xff]
        %v503 = vld [vmem:[#allocation7 + $0x70] sm:$0xff]
        %v504 = vld [vmem:[#allocation7 + $0x78] sm:$0xff]
        %505 = vmatpush.msra.mxu0 %v504
        %506 = vmatpush.msra.mxu0 %v503
        %507 = vmatpush.msra.mxu0 %v502
        %508 = vmatpush.msra.mxu0 %v501
        %509 = vmatpush.msra.mxu0 %v500
        %510 = vmatpush.msra.mxu0 %v499
        %511 = vmatpush.msra.mxu0 %v498
        %512 = vmatpush.msra.mxu0 %v497
        %513 = vmatpush.msra.mxu0 %v496
        %514 = vmatpush.msra.mxu0 %v495
        %515 = vmatpush.msra.mxu0 %v494
        %516 = vmatpush.msra.mxu0 %v493
        %517 = vmatpush.msra.mxu0 %v492
        %518 = vmatpush.msra.mxu0 %v491
        %519 = vmatpush.msra.mxu0 %v490
        %520 = vmatpush.msra.mxu0 %v489
        %521 = vmatmul.f32.gmra.mxu0 %v487
        %v522 = vpop.f32.mrf.mxu0
        %v523 = vadd.f32 0.0, %v522
        %524 = vmatmul.f32.gmra.mxu0 %v488
        %v525 = vpop.f32.mrf.mxu0
        %v526 = vadd.f32 0.0, %v525
        %527 = vdwg.mxu0
        %s528 = scalar_lea.vmem [#allocation7], 128
        %v529 = vld [vmem:[%s528] sm:$0xff]
        %v530 = vld [vmem:[%s528 + $0x8] sm:$0xff]
        %v531 = vld [vmem:[%s528 + $0x10] sm:$0xff]
        %v532 = vld [vmem:[%s528 + $0x18] sm:$0xff]
        %v533 = vld [vmem:[%s528 + $0x20] sm:$0xff]
        %v534 = vld [vmem:[%s528 + $0x28] sm:$0xff]
        %v535 = vld [vmem:[%s528 + $0x30] sm:$0xff]
        %v536 = vld [vmem:[%s528 + $0x38] sm:$0xff]
        %v537 = vld [vmem:[%s528 + $0x40] sm:$0xff]
        %v538 = vld [vmem:[%s528 + $0x48] sm:$0xff]
        %v539 = vld [vmem:[%s528 + $0x50] sm:$0xff]
        %v540 = vld [vmem:[%s528 + $0x58] sm:$0xff]
        %v541 = vld [vmem:[%s528 + $0x60] sm:$0xff]
        %v542 = vld [vmem:[%s528 + $0x68] sm:$0xff]
        %v543 = vld [vmem:[%s528 + $0x70] sm:$0xff]
        %v544 = vld [vmem:[%s528 + $0x78] sm:$0xff]
        %545 = vmatpush.msra.mxu0 %v544
        %546 = vmatpush.msra.mxu0 %v543
        %547 = vmatpush.msra.mxu0 %v542
        %548 = vmatpush.msra.mxu0 %v541
        %549 = vmatpush.msra.mxu0 %v540
        %550 = vmatpush.msra.mxu0 %v539
        %551 = vmatpush.msra.mxu0 %v538
        %552 = vmatpush.msra.mxu0 %v537
        %553 = vmatpush.msra.mxu0 %v536
        %554 = vmatpush.msra.mxu0 %v535
        %555 = vmatpush.msra.mxu0 %v534
        %556 = vmatpush.msra.mxu0 %v533
        %557 = vmatpush.msra.mxu0 %v532
        %558 = vmatpush.msra.mxu0 %v531
        %559 = vmatpush.msra.mxu0 %v530
        %560 = vmatpush.msra.mxu0 %v529
        %561 = vmatmul.f32.gmra.mxu0 %v487
        %v562 = vpop.f32.mrf.mxu0
        %v563 = vadd.f32 0.0, %v562
        %564 = vmatmul.f32.gmra.mxu0 %v488
        %v565 = vpop.f32.mrf.mxu0
        %v566 = vadd.f32 0.0, %v565
        %567 = vdwg.mxu0
        %s568 = scalar_lea.vmem [#allocation7], 256
        %v569 = vld [vmem:[%s568] sm:$0xff]
        %v570 = vld [vmem:[%s568 + $0x8] sm:$0xff]
        %v571 = vld [vmem:[%s568 + $0x10] sm:$0xff]
        %v572 = vld [vmem:[%s568 + $0x18] sm:$0xff]
        %v573 = vld [vmem:[%s568 + $0x20] sm:$0xff]
        %v574 = vld [vmem:[%s568 + $0x28] sm:$0xff]
        %v575 = vld [vmem:[%s568 + $0x30] sm:$0xff]
        %v576 = vld [vmem:[%s568 + $0x38] sm:$0xff]
        %v577 = vld [vmem:[%s568 + $0x40] sm:$0xff]
        %v578 = vld [vmem:[%s568 + $0x48] sm:$0xff]
        %v579 = vld [vmem:[%s568 + $0x50] sm:$0xff]
        %v580 = vld [vmem:[%s568 + $0x58] sm:$0xff]
        %v581 = vld [vmem:[%s568 + $0x60] sm:$0xff]
        %v582 = vld [vmem:[%s568 + $0x68] sm:$0xff]
        %v583 = vld [vmem:[%s568 + $0x70] sm:$0xff]
        %v584 = vld [vmem:[%s568 + $0x78] sm:$0xff]
        %585 = vmatpush.msra.mxu0 %v584
        %586 = vmatpush.msra.mxu0 %v583
        %587 = vmatpush.msra.mxu0 %v582
        %588 = vmatpush.msra.mxu0 %v581
        %589 = vmatpush.msra.mxu0 %v580
        %590 = vmatpush.msra.mxu0 %v579
        %591 = vmatpush.msra.mxu0 %v578
        %592 = vmatpush.msra.mxu0 %v577
        %593 = vmatpush.msra.mxu0 %v576
        %594 = vmatpush.msra.mxu0 %v575
        %595 = vmatpush.msra.mxu0 %v574
        %596 = vmatpush.msra.mxu0 %v573
        %597 = vmatpush.msra.mxu0 %v572
        %598 = vmatpush.msra.mxu0 %v571
        %599 = vmatpush.msra.mxu0 %v570
        %600 = vmatpush.msra.mxu0 %v569
        %601 = vmatmul.f32.gmra.mxu0 %v487
        %v602 = vpop.f32.mrf.mxu0
        %v603 = vadd.f32 0.0, %v602
        %604 = vmatmul.f32.gmra.mxu0 %v488
        %v605 = vpop.f32.mrf.mxu0
        %v606 = vadd.f32 0.0, %v605
        %607 = vdwg.mxu0
        %v610 = vrot.slane %v523, 7
        %v611 = vrot.slane %v526, 7
        %v612 = vsel %vm455, %v610, %v611
        %v615 = vsel %vm455, 0.0, %v610
        %v616 = vadd.f32 %v615, %v563
        %v617 = vadd.f32 %v612, %v566
        %v620 = vrot.slane %v603, 1
        %v621 = vrot.slane %v606, 1
        %v622 = vsel %vm466, %v620, %v621
        %v625 = vsel %vm466, %v621, 0.0
        %v626 = vadd.f32 %v616, %v622
        %v627 = vadd.f32 %v617, %v625
        %v628 = vld [vmem:[%s5] sm:$0x1]
        %v630 = vperm.slane %v628, 0
        %v632 = vmul.f32 %v626, %v630
        %v633 = vmul.f32 %v627, %v630
        %v634 = vld [vmem:[%s6] sm:$0x1]
        %v636 = vperm.slane %v634, 0
        %v638 = vadd.f32 %v632, %v636
        %v639 = vadd.f32 %v633, %v636
        %v640 = vadd.f32 %v638, %v332
        %v641 = vadd.f32 %v639, %v333
        %v642 = vmax.f32 %v640, 0.0
        %v643 = vmax.f32 %v641, 0.0
        %644 = vst [vmem:[%s331] sm:$0xff] %v642
        %645 = vst [vmem:[%s331 + $0x8] sm:$0xff] %v643
        %s646 = sand.u32 %s185, 1
        %s647 = scalar_lea.sflag [#allocation4], %s646
        %s648 = sand.u32 %s185, 1
        %s649 = smul.addr %s648, 16
        %s650 = scalar_lea.vmem [#allocation8], %s649
        // Predicated region
        $region61: #{tpu_custom_call.1} parent=47 // pred_check
          %p651 = pneg %p195
        $region62: #{tpu_custom_call.1} parent=47 // pred_check_branch
          %653 = sbr.rel (%p651) target = $region64
        $region63: #{tpu_custom_call.1} parent=47 // pred_region
          %655 = vsyncadd %s647, 0
          %s656 = smul.addr %s25, 2
          %s657 = smul.addr %s656, 8
          %s658 = scalar_lea.hbm %s7, %s657
          %s659 = sshll.u32 %s650, 4
          %s660 = int_to_ptr.vmem [resolvable:$true] %s659
          %s661 = sshll.u32 %s658, 4
          %s662 = int_to_ptr.hbm [resolvable:$true] %s661
          %667 = dma.vmem_to_hbm [thread:$0]  %s660, 256, %s662, %s647, 128, 128, 8
        $region64: #{tpu_custom_call.1} parent=47 // pred_fallthru
          _
      $region48: #{tpu_custom_call.1} parent=5 // pred_fallthru
        _
      %p668 = scmp.le.s32.totalorder 2, %s20
      // Predicated region
      $region65: #{tpu_custom_call.1} parent=5 // pred_check
        %p669 = pneg %p668
      $region66: #{tpu_custom_call.1} parent=5 // pred_check_branch
        %671 = sbr.rel (%p669) target = $region68
      $region67: #{tpu_custom_call.1} parent=5 // pred_region
        %s672 = ssub.s32 %s20, 2
        // Predicated region
        $region69: #{tpu_custom_call.1} parent=67 // pred_check
          %p673 = pneg %p201
        $region70: #{tpu_custom_call.1} parent=67 // pred_check_branch
          %675 = sbr.rel (%p673) target = $region72
        $region71: #{tpu_custom_call.1} parent=67 // pred_region
          %s676 = sand.u32 %s186, 1
          %s677 = scalar_lea.sflag [#allocation4], %s676
          %s678 = sand.u32 %s186, 1
          %s679 = smul.addr %s678, 16
          %s680 = scalar_lea.vmem [#allocation8], %s679
          %682 = dma.done %s677, 256
        $region72: #{tpu_custom_call.1} parent=67 // pred_fallthru
          _
      $region68: #{tpu_custom_call.1} parent=5 // pred_fallthru
        _
    $region6: #{tpu_custom_call.1} parent=1 // loop_footer
      %s24 = sadd.s32 1, %s20
    $region7: #{tpu_custom_call.1} parent=1 // loop_footer_branch
      %19 = sbr.rel target = $region3
    $region8: #{tpu_custom_call.1} parent=1 // loop_exit
      _
    %683 = vsyncpa [#allocation3], 1
    %s684 = scalar_lea.sflag [#allocation3], 1
    %685 = vsyncpa %s684, 1
    %686 = vsyncpa [#allocation6], 1
    %687 = vsyncpa [#allocation4], 1
    %s688 = scalar_lea.sflag [#allocation4], 1
    %689 = vsyncpa %s688, 1

</llo_original>
